<compile_context>
chip_gen: v5e
topology: v5e:2x2
jax: 0.10.0
libtpu: 0.0.40
codegen_flags: <defaults>
</compile_context>

<pallas_src>
import functools

import jax
import jax.numpy as jnp
from jax.experimental import pallas as pl
from jax.experimental.pallas import tpu as pltpu


def _round_up(v, m):
    return (v + m - 1) // m * m


def _conv_bn_relu_kernel(w_ref, x_ref, shift_ref, o_ref, *, k, dilation, wp, m_pad, c_out):
    # w_ref:     (K*K, Cout, Cin) f32   per-tap conv weight with BN scale folded in
    # x_ref:     (1, Cin, L_pad)  bf16  one image, spatially zero-padded and flattened
    # shift_ref: (Cout, 1)        f32   folded BN shift = beta - mean * scale
    # o_ref:     (1, Cout, M_pad)       lane-dense "full" output (valid cols sliced later)
    x_img = x_ref[0].astype(jnp.float32)                    # upcast once, (Cin, L_pad)
    acc = jnp.zeros((c_out, m_pad), jnp.float32)
    for kh in range(k):                                     # K*K static taps, unrolled
        for kw in range(k):
            delta = kh * dilation * wp + kw * dilation
            x_win = x_img[:, delta:delta + m_pad]           # (Cin, M_pad) shifted window
            acc = acc + jnp.dot(w_ref[kh * k + kw], x_win,
                                preferred_element_type=jnp.float32)
    o_ref[0] = jnp.maximum(acc + shift_ref[...], 0.0).astype(o_ref.dtype)


@functools.partial(
    jax.jit, static_argnames=("kernel_size", "stride", "padding", "dilation"))
def my_basic_conv2d(x, weight, gamma, beta, running_mean, running_var, *,
                    kernel_size, stride=1, padding=0, dilation=1, eps=1e-5):
    """x: (N, Cin, H, W) f32; weight: (Cout, Cin, K, K). Returns (N, Cout, Ho, Wo) f32."""
    n, c_in, h, w = x.shape
    c_out = weight.shape[0]
    k = kernel_size
    hp, wp = h + 2 * padding, w + 2 * padding
    h_out = (hp - dilation * (k - 1) - 1) // stride + 1
    w_out = (wp - dilation * (k - 1) - 1) // stride + 1

    # ---- Fold eval-mode BatchNorm2d into the conv ----
    scale = gamma * jax.lax.rsqrt(running_var + eps)                        # (Cout,)
    shift = (beta - running_mean * scale).reshape(c_out, 1).astype(jnp.float32)
    # Per-tap weights (K*K, Cout, Cin), tap = kh*K + kw, BN scale folded in; kept f32.
    w_taps = jnp.transpose(weight * scale[:, None, None, None],
                           (2, 3, 0, 1)).reshape(k * k, c_out, c_in).astype(jnp.float32)

    # ---- Shifted-window geometry ----
    # out[n,co,i,j] lives at m = stride*(i*Wp + j) of out_full[n,co,m].  Extra columns
    # (j >= Wo) and the zero tail only feed discarded outputs.
    m_needed = stride * h_out * wp
    m_pad = _round_up(m_needed, 128)                        # lane-dense output columns
    max_delta = (k - 1) * dilation * (wp + 1)
    l_pad = _round_up(max(hp * wp, m_pad + max_delta), 128)

    # Raw input: cast to bf16 once, pad spatially, flatten (contiguous -> free), pad tail.
    x_p = jnp.pad(x.astype(jnp.bfloat16),
                  ((0, 0), (0, 0), (padding, padding), (padding, padding)))
    x_flat = jnp.pad(x_p.reshape(n, c_in, hp * wp),
                     ((0, 0), (0, 0), (0, l_pad - hp * wp)))

    # VMEM budget derived from the tile footprint (double-buffered) + generous headroom.
    tile_bytes = (2 * c_in * l_pad * 2                       # x block, bf16, 2 buffers
                  + 2 * c_out * m_pad * 4                    # out block, f32, 2 buffers
                  + 2 * k * k * max(c_out, 8) * 128 * 4      # weights (lane-padded)
                  + 2 * 8 * 128 * 4)                         # shift
    vmem_limit = min(int(tile_bytes) + (8 << 20), 64 << 20)

    cost = pl.CostEstimate(
        flops=2 * n * c_out * c_in * k * k * m_pad,
        transcendentals=0,
        bytes_accessed=(n * c_in * l_pad * 2                 # input (bf16)
                        + k * k * c_out * c_in * 4           # weights
                        + c_out * 4                          # shift
                        + n * c_out * m_pad * 4),            # output (f32)
    )

    kernel = functools.partial(_conv_bn_relu_kernel, k=k, dilation=dilation,
                               wp=wp, m_pad=m_pad, c_out=c_out)

    out_full = pl.pallas_call(
        kernel,
        out_shape=jax.ShapeDtypeStruct((n, c_out, m_pad), x.dtype),
        grid=(n,),
        in_specs=[
            pl.BlockSpec((k * k, c_out, c_in), lambda i: (0, 0, 0)),  # weights: resident
            pl.BlockSpec((1, c_in, l_pad), lambda i: (i, 0, 0)),      # one image per step
            pl.BlockSpec((c_out, 1), lambda i: (0, 0)),               # BN shift: resident
        ],
        out_specs=pl.BlockSpec((1, c_out, m_pad), lambda i: (i, 0, 0)),
        compiler_params=pltpu.CompilerParams(
            dimension_semantics=("parallel",),    # images independent -> both TCs on v7x
            vmem_limit_bytes=vmem_limit,
        ),
        cost_estimate=cost,
    )(w_taps, x_flat, shift)

    # Valid outputs: m = stride*(i*Wp + j) -> strided slice, reshape, drop pad columns.
    out = out_full[:, :, :stride * h_out * wp:stride]
    out = out.reshape(n, c_out, h_out, wp)[:, :, :, :w_out]
    return out


def _reference(x, weight, gamma, beta, running_mean, running_var,
               *, stride, padding, dilation, eps=1e-5):
    y = jax.lax.conv_general_dilated(
        x, weight, window_strides=(stride, stride),
        padding=[(padding, padding), (padding, padding)],
        rhs_dilation=(dilation, dilation),
        dimension_numbers=("NCHW", "OIHW", "NCHW"))
    scale = (gamma / jnp.sqrt(running_var + eps)).reshape(1, -1, 1, 1)
    shift = (beta - running_mean * gamma / jnp.sqrt(running_var + eps)).reshape(1, -1, 1, 1)
    return jnp.maximum(y * scale + shift, 0.0)


if __name__ == "__main__":
    # Module config: in_planes=4, out_planes=8, kernel_size=3, stride=1, padding=1
    N, C_IN, C_OUT, H, W, K = 2, 4, 8, 16, 16, 3
    STRIDE, PAD, DIL = 1, 1, 1

    key = jax.random.PRNGKey(0)
    kx, kw_key, kg, kb, km, kv = jax.random.split(key, 6)

    x = jax.random.normal(kx, (N, C_IN, H, W), dtype=jnp.float32)
    weight = 0.1 * jax.random.normal(kw_key, (C_OUT, C_IN, K, K), dtype=jnp.float32)
    gamma = 1.0 + 0.1 * jax.random.normal(kg, (C_OUT,), dtype=jnp.float32)
    beta = 0.1 * jax.random.normal(kb, (C_OUT,), dtype=jnp.float32)
    running_mean = 0.1 * jax.random.normal(km, (C_OUT,), dtype=jnp.float32)
    running_var = jnp.abs(jax.random.normal(kv, (C_OUT,), dtype=jnp.float32)) + 0.5

    out = my_basic_conv2d(x, weight, gamma, beta, running_mean, running_var,
                          kernel_size=K, stride=STRIDE, padding=PAD, dilation=DIL)
    out = jax.block_until_ready(out)

    ref = _reference(x, weight, gamma, beta, running_mean, running_var,
                     stride=STRIDE, padding=PAD, dilation=DIL)
    assert out.shape == (N, C_OUT, H, W)
    # bf16 input to the matmul -> relaxed tolerance vs the f32 reference.
    assert jnp.allclose(out, ref, atol=5e-2, rtol=5e-2), "mismatch vs reference"

    print("KERNEL_OK")
</pallas_src>

<mosaic_0001>
module attributes {stable_mosaic.version = 11 : i64} {
  func.func @_conv_bn_relu_kernel(%arg0: i32, %arg1: memref<9x8x4xf32, #tpu.memory_space<vmem>>, %arg2: memref<1x4x512xbf16, #tpu.memory_space<vmem>>, %arg3: memref<8x1xf32, #tpu.memory_space<vmem>>, %arg4: memref<1x8x384xf32, #tpu.memory_space<vmem>>) attributes {dimension_semantics = [#tpu.dimension_semantics<parallel>], iteration_bounds = array<i64: 2>, scalar_prefetch = 0 : i64, scratch_operands = 0 : i64, tpu.core_type = #tpu.core_type<tc>, window_params = [{pipeline_mode = #tpu.pipeline_mode<synchronous>, transform_indices = @transform_0, window_bounds = array<i64: 9, 8, 4>}, {transform_indices = @transform_1, window_bounds = array<i64: 1, 4, 512>}, {pipeline_mode = #tpu.pipeline_mode<synchronous>, transform_indices = @transform_2, window_bounds = array<i64: 8, 1>}, {transform_indices = @transform_3, window_bounds = array<i64: 1, 8, 384>}]} {
    %c0 = arith.constant 0 : index
    %c0_0 = arith.constant 0 : index
    %c0_1 = arith.constant 0 : index
    %0 = vector.load %arg2[%c0, %c0_0, %c0_1] : memref<1x4x512xbf16, #tpu.memory_space<vmem>>, vector<1x4x512xbf16>
    %1 = vector.shape_cast %0 : vector<1x4x512xbf16> to vector<4x512xbf16>
    %2 = arith.extf %1 : vector<4x512xbf16> to vector<4x512xf32>
    %cst = arith.constant 0.000000e+00 : f32
    %3 = vector.broadcast %cst : f32 to vector<8x384xf32>
    %4 = vector.extract_strided_slice %2 {offsets = [0, 0], sizes = [4, 384], strides = [1, 1]} : vector<4x512xf32> to vector<4x384xf32>
    %c0_2 = arith.constant 0 : index
    %c0_3 = arith.constant 0 : index
    %c0_4 = arith.constant 0 : index
    %5 = vector.load %arg1[%c0_2, %c0_3, %c0_4] : memref<9x8x4xf32, #tpu.memory_space<vmem>>, vector<1x8x4xf32>
    %6 = vector.shape_cast %5 : vector<1x8x4xf32> to vector<8x4xf32>
    %cst_5 = arith.constant dense<0.000000e+00> : vector<8x384xf32>
    %7 = tpu.matmul %6, %4, %cst_5 {dimension_numbers = #tpu.dot_dimension_numbers<[1], [0], [0], [1], [0, 0, 1, 1], [], []>} : vector<8x4xf32>, vector<4x384xf32>, vector<8x384xf32> -> vector<8x384xf32>
    %8 = arith.addf %3, %7 : vector<8x384xf32>
    %9 = vector.extract_strided_slice %2 {offsets = [0, 1], sizes = [4, 384], strides = [1, 1]} : vector<4x512xf32> to vector<4x384xf32>
    %c1 = arith.constant 1 : index
    %c0_6 = arith.constant 0 : index
    %c0_7 = arith.constant 0 : index
    %10 = vector.load %arg1[%c1, %c0_6, %c0_7] : memref<9x8x4xf32, #tpu.memory_space<vmem>>, vector<1x8x4xf32>
    %11 = vector.shape_cast %10 : vector<1x8x4xf32> to vector<8x4xf32>
    %cst_8 = arith.constant dense<0.000000e+00> : vector<8x384xf32>
    %12 = tpu.matmul %11, %9, %cst_8 {dimension_numbers = #tpu.dot_dimension_numbers<[1], [0], [0], [1], [0, 0, 1, 1], [], []>} : vector<8x4xf32>, vector<4x384xf32>, vector<8x384xf32> -> vector<8x384xf32>
    %13 = arith.addf %8, %12 : vector<8x384xf32>
    %14 = vector.extract_strided_slice %2 {offsets = [0, 2], sizes = [4, 384], strides = [1, 1]} : vector<4x512xf32> to vector<4x384xf32>
    %c2 = arith.constant 2 : index
    %c0_9 = arith.constant 0 : index
    %c0_10 = arith.constant 0 : index
    %15 = vector.load %arg1[%c2, %c0_9, %c0_10] : memref<9x8x4xf32, #tpu.memory_space<vmem>>, vector<1x8x4xf32>
    %16 = vector.shape_cast %15 : vector<1x8x4xf32> to vector<8x4xf32>
    %cst_11 = arith.constant dense<0.000000e+00> : vector<8x384xf32>
    %17 = tpu.matmul %16, %14, %cst_11 {dimension_numbers = #tpu.dot_dimension_numbers<[1], [0], [0], [1], [0, 0, 1, 1], [], []>} : vector<8x4xf32>, vector<4x384xf32>, vector<8x384xf32> -> vector<8x384xf32>
    %18 = arith.addf %13, %17 : vector<8x384xf32>
    %19 = vector.extract_strided_slice %2 {offsets = [0, 18], sizes = [4, 384], strides = [1, 1]} : vector<4x512xf32> to vector<4x384xf32>
    %c3 = arith.constant 3 : index
    %c0_12 = arith.constant 0 : index
    %c0_13 = arith.constant 0 : index
    %20 = vector.load %arg1[%c3, %c0_12, %c0_13] : memref<9x8x4xf32, #tpu.memory_space<vmem>>, vector<1x8x4xf32>
    %21 = vector.shape_cast %20 : vector<1x8x4xf32> to vector<8x4xf32>
    %cst_14 = arith.constant dense<0.000000e+00> : vector<8x384xf32>
    %22 = tpu.matmul %21, %19, %cst_14 {dimension_numbers = #tpu.dot_dimension_numbers<[1], [0], [0], [1], [0, 0, 1, 1], [], []>} : vector<8x4xf32>, vector<4x384xf32>, vector<8x384xf32> -> vector<8x384xf32>
    %23 = arith.addf %18, %22 : vector<8x384xf32>
    %24 = vector.extract_strided_slice %2 {offsets = [0, 19], sizes = [4, 384], strides = [1, 1]} : vector<4x512xf32> to vector<4x384xf32>
    %c4 = arith.constant 4 : index
    %c0_15 = arith.constant 0 : index
    %c0_16 = arith.constant 0 : index
    %25 = vector.load %arg1[%c4, %c0_15, %c0_16] : memref<9x8x4xf32, #tpu.memory_space<vmem>>, vector<1x8x4xf32>
    %26 = vector.shape_cast %25 : vector<1x8x4xf32> to vector<8x4xf32>
    %cst_17 = arith.constant dense<0.000000e+00> : vector<8x384xf32>
    %27 = tpu.matmul %26, %24, %cst_17 {dimension_numbers = #tpu.dot_dimension_numbers<[1], [0], [0], [1], [0, 0, 1, 1], [], []>} : vector<8x4xf32>, vector<4x384xf32>, vector<8x384xf32> -> vector<8x384xf32>
    %28 = arith.addf %23, %27 : vector<8x384xf32>
    %29 = vector.extract_strided_slice %2 {offsets = [0, 20], sizes = [4, 384], strides = [1, 1]} : vector<4x512xf32> to vector<4x384xf32>
    %c5 = arith.constant 5 : index
    %c0_18 = arith.constant 0 : index
    %c0_19 = arith.constant 0 : index
    %30 = vector.load %arg1[%c5, %c0_18, %c0_19] : memref<9x8x4xf32, #tpu.memory_space<vmem>>, vector<1x8x4xf32>
    %31 = vector.shape_cast %30 : vector<1x8x4xf32> to vector<8x4xf32>
    %cst_20 = arith.constant dense<0.000000e+00> : vector<8x384xf32>
    %32 = tpu.matmul %31, %29, %cst_20 {dimension_numbers = #tpu.dot_dimension_numbers<[1], [0], [0], [1], [0, 0, 1, 1], [], []>} : vector<8x4xf32>, vector<4x384xf32>, vector<8x384xf32> -> vector<8x384xf32>
    %33 = arith.addf %28, %32 : vector<8x384xf32>
    %34 = vector.extract_strided_slice %2 {offsets = [0, 36], sizes = [4, 384], strides = [1, 1]} : vector<4x512xf32> to vector<4x384xf32>
    %c6 = arith.constant 6 : index
    %c0_21 = arith.constant 0 : index
    %c0_22 = arith.constant 0 : index
    %35 = vector.load %arg1[%c6, %c0_21, %c0_22] : memref<9x8x4xf32, #tpu.memory_space<vmem>>, vector<1x8x4xf32>
    %36 = vector.shape_cast %35 : vector<1x8x4xf32> to vector<8x4xf32>
    %cst_23 = arith.constant dense<0.000000e+00> : vector<8x384xf32>
    %37 = tpu.matmul %36, %34, %cst_23 {dimension_numbers = #tpu.dot_dimension_numbers<[1], [0], [0], [1], [0, 0, 1, 1], [], []>} : vector<8x4xf32>, vector<4x384xf32>, vector<8x384xf32> -> vector<8x384xf32>
    %38 = arith.addf %33, %37 : vector<8x384xf32>
    %39 = vector.extract_strided_slice %2 {offsets = [0, 37], sizes = [4, 384], strides = [1, 1]} : vector<4x512xf32> to vector<4x384xf32>
    %c7 = arith.constant 7 : index
    %c0_24 = arith.constant 0 : index
    %c0_25 = arith.constant 0 : index
    %40 = vector.load %arg1[%c7, %c0_24, %c0_25] : memref<9x8x4xf32, #tpu.memory_space<vmem>>, vector<1x8x4xf32>
    %41 = vector.shape_cast %40 : vector<1x8x4xf32> to vector<8x4xf32>
    %cst_26 = arith.constant dense<0.000000e+00> : vector<8x384xf32>
    %42 = tpu.matmul %41, %39, %cst_26 {dimension_numbers = #tpu.dot_dimension_numbers<[1], [0], [0], [1], [0, 0, 1, 1], [], []>} : vector<8x4xf32>, vector<4x384xf32>, vector<8x384xf32> -> vector<8x384xf32>
    %43 = arith.addf %38, %42 : vector<8x384xf32>
    %44 = vector.extract_strided_slice %2 {offsets = [0, 38], sizes = [4, 384], strides = [1, 1]} : vector<4x512xf32> to vector<4x384xf32>
    %c8 = arith.constant 8 : index
    %c0_27 = arith.constant 0 : index
    %c0_28 = arith.constant 0 : index
    %45 = vector.load %arg1[%c8, %c0_27, %c0_28] : memref<9x8x4xf32, #tpu.memory_space<vmem>>, vector<1x8x4xf32>
    %46 = vector.shape_cast %45 : vector<1x8x4xf32> to vector<8x4xf32>
    %cst_29 = arith.constant dense<0.000000e+00> : vector<8x384xf32>
    %47 = tpu.matmul %46, %44, %cst_29 {dimension_numbers = #tpu.dot_dimension_numbers<[1], [0], [0], [1], [0, 0, 1, 1], [], []>} : vector<8x4xf32>, vector<4x384xf32>, vector<8x384xf32> -> vector<8x384xf32>
    %48 = arith.addf %43, %47 : vector<8x384xf32>
    %c0_30 = arith.constant 0 : index
    %c0_31 = arith.constant 0 : index
    %49 = vector.load %arg3[%c0_30, %c0_31] : memref<8x1xf32, #tpu.memory_space<vmem>>, vector<8x1xf32>
    %50 = vector.broadcast %49 : vector<8x1xf32> to vector<8x384xf32>
    %51 = arith.addf %48, %50 : vector<8x384xf32>
    %cst_32 = arith.constant 0.000000e+00 : f32
    %52 = vector.broadcast %cst_32 : f32 to vector<8x384xf32>
    %53 = arith.maximumf %51, %52 : vector<8x384xf32>
    %c0_33 = arith.constant 0 : index
    %c0_34 = arith.constant 0 : index
    %c0_35 = arith.constant 0 : index
    %54 = vector.load %arg4[%c0_33, %c0_34, %c0_35] : memref<1x8x384xf32, #tpu.memory_space<vmem>>, vector<1x8x384xf32>
    %55 = vector.shape_cast %54 : vector<1x8x384xf32> to vector<8x384xf32>
    %56 = vector.shape_cast %53 : vector<8x384xf32> to vector<1x8x384xf32>
    tpu.vector_store %arg4[%c0_33, %c0_34, %c0_35], %56 {strides = array<i32>} : memref<1x8x384xf32, #tpu.memory_space<vmem>>, vector<1x8x384xf32>,
    return
  }
  func.func @transform_0(%arg0: i32) -> (i32, i32, i32) {
    %c0_i32 = arith.constant 0 : i32
    %c0_i32_0 = arith.constant 0 : i32
    %c0_i32_1 = arith.constant 0 : i32
    %c0_i32_2 = arith.constant 0 : i32
    return %c0_i32, %c0_i32_0, %c0_i32_1 : i32, i32, i32
  }
  func.func @transform_1(%arg0: i32) -> (i32, i32, i32) {
    %c0_i32 = arith.constant 0 : i32
    %c0_i32_0 = arith.constant 0 : i32
    %c0_i32_1 = arith.constant 0 : i32
    return %arg0, %c0_i32, %c0_i32_0 : i32, i32, i32
  }
  func.func @transform_2(%arg0: i32) -> (i32, i32) {
    %c0_i32 = arith.constant 0 : i32
    %c0_i32_0 = arith.constant 0 : i32
    %c0_i32_1 = arith.constant 0 : i32
    return %c0_i32, %c0_i32_0 : i32, i32
  }
  func.func @transform_3(%arg0: i32) -> (i32, i32, i32) {
    %c0_i32 = arith.constant 0 : i32
    %c0_i32_0 = arith.constant 0 : i32
    %c0_i32_1 = arith.constant 0 : i32
    return %arg0, %c0_i32, %c0_i32_0 : i32, i32, i32
  }
}

</mosaic_0001>

<llo_original>
// kernel: my_basic_conv2d.1
$region0: #{my_basic_conv2d.1}
  #allocation0 [shape = 'u32[]', space=smem, size = 0x4, offset = 0x4, fixed_abs, tag = 'smem constant byte address 0x4 - core index']
  #allocation1 [shape = 'u32[72,128]{1,0:T(1,128)}', space=vmem, size = 0x9000, scoped, tag = 'internal scratch']
  %s0 = inlined_call_operand.vmem [shape: f32[9,8,4], index: 0, kind: input, shape index: {}]
  %s1 = inlined_call_operand.vmem [shape: bf16[2,4,512], index: 1, kind: input, shape index: {}]
  %s2 = inlined_call_operand.vmem [shape: f32[8,1], index: 2, kind: input, shape index: {}]
  %s3 = inlined_call_operand.vmem [shape: f32[2,8,384], index: 3, kind: output, shape index: {}]
  %s4 = sld [smem:[#allocation0]]
  $region45: #{my_basic_conv2d.1} parent=0
    _
  %s6 = ssub.s32 1, %s4
  %s7 = scalar_select 0, %s6, %s4
  loop: start=0, step=1, limit=4
  $region2: #{my_basic_conv2d.1} parent=0 // loop_pre_header
    _
  $region3: #{my_basic_conv2d.1} parent=0 // loop_header
    %s9 = sphi 0, %s13
    %p10 = scmp.ge.s32.totalorder %s9, 4
    %s17 = sphi 0, %s17
    %s19 = sphi 0, %s17
    %s20 = sphi 0, %s19
    %s34 = sphi 0, %s20
    %s40 = sphi 0, %s42
    %s43 = sphi 0, %s40
    %s44 = sphi 0, %s43
    %s60 = sphi 0, %s44
    %s64 = sphi 0, %s64
    %s66 = sphi 0, %s64
    %s67 = sphi 0, %s66
    %s81 = sphi 0, %s67
    %s87 = sphi 0, %s89
    %s90 = sphi 0, %s87
    %s91 = sphi 0, %s90
    %s107 = sphi 0, %s91
  $region4: #{my_basic_conv2d.1} parent=0 // loop_header_branch
    %12 = sbr.rel (%p10) target = $region8
  $region5: #{my_basic_conv2d.1} parent=0 // loop_body
    %s14 = ssub.s32 %s9, 1
    %s15 = ssub.s32 %s9, 2
    %s16 = sadd.s32 %s9, 1
    %s18 = sadd.s32 %s17, 1
    %p21 = scmp.eq.s32.totalorder %s9, 1
    %p22 = scmp.ne.s32.totalorder %s17, %s19
    %p23 = scmp.eq.s32.totalorder %s9, 0
    %p24 = por %p22, %p23
    %p25 = scmp.ne.s32.totalorder %s17, %s19
    %p26 = scmp.eq.s32.totalorder %s14, 1
    %p27 = por %p25, %p26
    %p28 = scmp.ne.s32.totalorder %s19, %s20
    %p29 = scmp.eq.s32.totalorder %s14, 0
    %p30 = por %p28, %p29
    %p31 = scmp.ne.s32.totalorder %s19, %s20
    %p32 = scmp.eq.s32.totalorder %s15, 1
    %p33 = por %p31, %p32
    %p35 = scmp.ne.s32.totalorder %s20, %s34
    %p36 = scmp.eq.s32.totalorder %s15, 0
    %p37 = por %p35, %p36
    %s38 = ssub.s32 %s9, %s16
    %p39 = scmp.eq.s32.totalorder %s38, 0
    %s41 = sadd.s32 %s40, 1
    %s42 = scalar_select %p39, %s40, %s41
    %p45 = pneg %p39
    %p46 = scmp.eq.s32.totalorder %s9, 1
    %p47 = por %p45, %p46
    %p48 = scmp.ne.s32.totalorder %s40, %s43
    %p49 = scmp.eq.s32.totalorder %s9, 0
    %p50 = por %p48, %p49
    %p51 = scmp.ne.s32.totalorder %s40, %s43
    %p52 = scmp.eq.s32.totalorder %s14, 1
    %p53 = por %p51, %p52
    %p54 = scmp.ne.s32.totalorder %s43, %s44
    %p55 = scmp.eq.s32.totalorder %s14, 0
    %p56 = por %p54, %p55
    %p57 = scmp.ne.s32.totalorder %s43, %s44
    %p58 = scmp.eq.s32.totalorder %s15, 1
    %p59 = por %p57, %p58
    %p61 = scmp.ne.s32.totalorder %s44, %s60
    %p62 = scmp.eq.s32.totalorder %s15, 0
    %p63 = por %p61, %p62
    %s65 = sadd.s32 %s64, 1
    %p68 = scmp.eq.s32.totalorder %s9, 1
    %p69 = scmp.ne.s32.totalorder %s64, %s66
    %p70 = scmp.eq.s32.totalorder %s9, 0
    %p71 = por %p69, %p70
    %p72 = scmp.ne.s32.totalorder %s64, %s66
    %p73 = scmp.eq.s32.totalorder %s14, 1
    %p74 = por %p72, %p73
    %p75 = scmp.ne.s32.totalorder %s66, %s67
    %p76 = scmp.eq.s32.totalorder %s14, 0
    %p77 = por %p75, %p76
    %p78 = scmp.ne.s32.totalorder %s66, %s67
    %p79 = scmp.eq.s32.totalorder %s15, 1
    %p80 = por %p78, %p79
    %p82 = scmp.ne.s32.totalorder %s67, %s81
    %p83 = scmp.eq.s32.totalorder %s15, 0
    %p84 = por %p82, %p83
    %s85 = ssub.s32 %s9, %s16
    %p86 = scmp.eq.s32.totalorder %s85, 0
    %s88 = sadd.s32 %s87, 1
    %s89 = scalar_select %p86, %s87, %s88
    %p92 = pneg %p86
    %p93 = scmp.eq.s32.totalorder %s9, 1
    %p94 = por %p92, %p93
    %p95 = scmp.ne.s32.totalorder %s87, %s90
    %p96 = scmp.eq.s32.totalorder %s9, 0
    %p97 = por %p95, %p96
    %p98 = scmp.ne.s32.totalorder %s87, %s90
    %p99 = scmp.eq.s32.totalorder %s14, 1
    %p100 = por %p98, %p99
    %p101 = scmp.ne.s32.totalorder %s90, %s91
    %p102 = scmp.eq.s32.totalorder %s14, 0
    %p103 = por %p101, %p102
    %p104 = scmp.ne.s32.totalorder %s90, %s91
    %p105 = scmp.eq.s32.totalorder %s15, 1
    %p106 = por %p104, %p105
    %p108 = scmp.ne.s32.totalorder %s91, %s107
    %p109 = scmp.eq.s32.totalorder %s15, 0
    %p110 = por %p108, %p109
    %p111 = scmp.le.s32.totalorder 1, %s9
    %p112 = scmp.lt.s32.totalorder %s9, 3
    %p113 = pnand %p111, %p112
    %p114 = pneg %p113
    // Predicated region
    $region9: #{my_basic_conv2d.1} parent=5 // pred_check
      _
    $region10: #{my_basic_conv2d.1} parent=5 // pred_check_branch
      %116 = sbr.rel (%p113) target = $region12
    $region11: #{my_basic_conv2d.1} parent=5 // pred_region
      %s117 = ssub.s32 %s9, 1
      // Predicated region
      $region13: #{my_basic_conv2d.1} parent=11 // pred_check
        %p118 = pneg %p30
      $region14: #{my_basic_conv2d.1} parent=11 // pred_check_branch
        %120 = sbr.rel (%p118) target = $region16
      $region15: #{my_basic_conv2d.1} parent=11 // pred_region
        _
      $region16: #{my_basic_conv2d.1} parent=11 // pred_fallthru
        _
      // Predicated region
      $region17: #{my_basic_conv2d.1} parent=11 // pred_check
        %p121 = pneg %p77
      $region18: #{my_basic_conv2d.1} parent=11 // pred_check_branch
        %123 = sbr.rel (%p121) target = $region20
      $region19: #{my_basic_conv2d.1} parent=11 // pred_region
        _
      $region20: #{my_basic_conv2d.1} parent=11 // pred_fallthru
        _
    $region12: #{my_basic_conv2d.1} parent=5 // pred_fallthru
      _
    %p124 = scmp.lt.s32.totalorder %s9, 2
    // Predicated region
    $region21: #{my_basic_conv2d.1} parent=5 // pred_check
      %p125 = pneg %p124
    $region22: #{my_basic_conv2d.1} parent=5 // pred_check_branch
      %127 = sbr.rel (%p125) target = $region24
    $region23: #{my_basic_conv2d.1} parent=5 // pred_region
      // Predicated region
      $region25: #{my_basic_conv2d.1} parent=23 // pred_check
        %p128 = pneg %p50
      $region26: #{my_basic_conv2d.1} parent=23 // pred_check_branch
        %130 = sbr.rel (%p128) target = $region28
      $region27: #{my_basic_conv2d.1} parent=23 // pred_region
        %p131 = scmp.lt.s32.totalorder %s9, 1
        %s132 = scalar_select %p131, %s9, 1
        %s133 = smul.addr %s132, 4
        %s134 = smul.addr %s133, 2
        %s135 = scalar_lea.vmem %s1, %s134
      $region28: #{my_basic_conv2d.1} parent=23 // pred_fallthru
        _
    $region24: #{my_basic_conv2d.1} parent=5 // pred_fallthru
      _
    %p136 = scmp.le.s32.totalorder 1, %s9
    %p137 = scmp.lt.s32.totalorder %s9, 3
    %p138 = pnand %p136, %p137
    %p139 = pneg %p138
    // Predicated region
    $region29: #{my_basic_conv2d.1} parent=5 // pred_check
      _
    $region30: #{my_basic_conv2d.1} parent=5 // pred_check_branch
      %141 = sbr.rel (%p138) target = $region32
    $region31: #{my_basic_conv2d.1} parent=5 // pred_region
      %s142 = ssub.s32 %s9, 1
      %p143 = pneg %p30
      %p144 = pneg %p27
      %p145 = scmp.lt.s32.totalorder %s14, 1
      %s146 = scalar_select %p145, %s14, 1
      %s147 = smul.addr %s146, 4
      %s148 = smul.addr %s147, 2
      %s149 = scalar_lea.vmem %s1, %s148
      %p150 = pneg %p56
      %p151 = pneg %p53
      %p152 = pneg %p77
      %p153 = pneg %p74
      %p154 = pneg %p103
      %p155 = pneg %p100
      %p156 = scmp.lt.s32.totalorder %s14, 1
      %s157 = scalar_select %p156, %s14, 1
      %s158 = smul.addr %s157, 3
      %s159 = smul.addr %s158, 8
      %s160 = scalar_lea.vmem %s3, %s159
      %p161 = scmp.lt.s32.totalorder %s14, 1
      %s162 = scalar_select %p161, %s14, 1
      %s163 = smul.addr %s162, 4
      %s164 = smul.addr %s163, 2
      %s165 = scalar_lea.vmem %s1, %s164
      %p166 = scmp.lt.s32.totalorder %s14, 1
      %s167 = scalar_select %p166, %s14, 1
      %s168 = smul.addr %s167, 3
      %s169 = smul.addr %s168, 8
      %s170 = scalar_lea.vmem %s3, %s169
      %v171 = vld [vmem:[%s165] sm:$0xff]
      %v172 = vunpack.c.l.bf16 %v171
      %v173 = vunpack.c.h.bf16 %v171
      %v174 = vld [vmem:[%s0] sm:$0xff]
      %s175 = scalar_lea.vmem %s0, 8
      %v176 = vld [vmem:[%s175] sm:$0xff]
      %179 = vst [vmem:[#allocation1] ss:$2 sm:$0xff] %v172
      %s180 = scalar_lea.vmem [#allocation1], 16
      %181 = vst [vmem:[%s180] ss:$2 sm:$0xff] %v173
      %v182 = vld.sshfl [vmem:[#allocation1] sm:$0xff pattern:$0x75316420]
      %v183 = vld.sshfl [vmem:[#allocation1 + $0x8] sm:$0xff pattern:$0x75316420]
      %v184 = vld.sshfl [vmem:[#allocation1 + $0x10] sm:$0xff pattern:$0x75316420]
      %v185 = vld.sshfl [vmem:[#allocation1 + $0x18] sm:$0xff pattern:$0x75316420]
      %186 = vrot.lane.b32.xlu0 %v182, 127
      %v187 = vpop.permute.xlu0 %186
      %188 = vrot.lane.b32.xlu0 %v183, 127
      %v189 = vpop.permute.xlu0 %188
      %190 = vrot.lane.b32.xlu0 %v184, 127
      %v191 = vpop.permute.xlu0 %190
      %192 = vrot.lane.b32.xlu0 %v185, 127
      %v193 = vpop.permute.xlu0 %192
      %vm194 = vcmask 1039360
      %v195 = vsel %vm194, %v187, %v189
      %v196 = vsel %vm194, %v189, %v191
      %v197 = vsel %vm194, %v191, %v193
      %vm198 = vcmask 31744
      %v200 = vsel %vm198, %v176, 0
      %vm202 = vcmask 1043456
      %v203 = vsel %vm202, %v195, 0
      %v205 = vsel %vm202, %v196, 0
      %v207 = vsel %vm202, %v197, 0
      %209 = vmatpush.msra.mxu0 0.0
      %210 = vmatpush.msra.mxu0 0.0
      %211 = vmatpush.msra.mxu0 0.0
      %212 = vmatpush.msra.mxu0 0.0
      %213 = vmatpush.msra.mxu0 0.0
      %214 = vmatpush.msra.mxu0 0.0
      %215 = vmatpush.msra.mxu0 0.0
      %216 = vmatpush.msra.mxu0 0.0
      %217 = vmatpush.msra.mxu0 0.0
      %218 = vmatpush.msra.mxu0 0.0
      %219 = vmatpush.msra.mxu0 0.0
      %220 = vmatpush.msra.mxu0 0.0
      %221 = vmatpush.msra.mxu0 0.0
      %222 = vmatpush.msra.mxu0 0.0
      %223 = vmatpush.msra.mxu0 0.0
      %224 = vmatpush.msra.mxu0 %v203
      %225 = vmatmul.f32.gmra.mxu0 %v200
      %v226 = vpop.f32.mrf.mxu0
      %v227 = vadd.f32 0.0, %v226
      %228 = vdwg.mxu0
      %229 = vmatpush.msra.mxu0 0.0
      %230 = vmatpush.msra.mxu0 0.0
      %231 = vmatpush.msra.mxu0 0.0
      %232 = vmatpush.msra.mxu0 0.0
      %233 = vmatpush.msra.mxu0 0.0
      %234 = vmatpush.msra.mxu0 0.0
      %235 = vmatpush.msra.mxu0 0.0
      %236 = vmatpush.msra.mxu0 0.0
      %237 = vmatpush.msra.mxu0 0.0
      %238 = vmatpush.msra.mxu0 0.0
      %239 = vmatpush.msra.mxu0 0.0
      %240 = vmatpush.msra.mxu0 0.0
      %241 = vmatpush.msra.mxu0 0.0
      %242 = vmatpush.msra.mxu0 0.0
      %243 = vmatpush.msra.mxu0 0.0
      %244 = vmatpush.msra.mxu0 %v205
      %245 = vmatmul.f32.gmra.mxu0 %v200
      %v246 = vpop.f32.mrf.mxu0
      %v247 = vadd.f32 0.0, %v246
      %248 = vdwg.mxu0
      %249 = vmatpush.msra.mxu0 0.0
      %250 = vmatpush.msra.mxu0 0.0
      %251 = vmatpush.msra.mxu0 0.0
      %252 = vmatpush.msra.mxu0 0.0
      %253 = vmatpush.msra.mxu0 0.0
      %254 = vmatpush.msra.mxu0 0.0
      %255 = vmatpush.msra.mxu0 0.0
      %256 = vmatpush.msra.mxu0 0.0
      %257 = vmatpush.msra.mxu0 0.0
      %258 = vmatpush.msra.mxu0 0.0
      %259 = vmatpush.msra.mxu0 0.0
      %260 = vmatpush.msra.mxu0 0.0
      %261 = vmatpush.msra.mxu0 0.0
      %262 = vmatpush.msra.mxu0 0.0
      %263 = vmatpush.msra.mxu0 0.0
      %264 = vmatpush.msra.mxu0 %v207
      %265 = vmatmul.f32.gmra.mxu0 %v200
      %v266 = vpop.f32.mrf.mxu0
      %v267 = vadd.f32 0.0, %v266
      %268 = vdwg.mxu0
      %269 = vst [vmem:[#allocation1] ss:$2 sm:$0xff] %v172
      %s270 = scalar_lea.vmem [#allocation1], 16
      %271 = vst [vmem:[%s270] ss:$2 sm:$0xff] %v173
      %v272 = vld.sshfl [vmem:[#allocation1] sm:$0xff pattern:$0x75316420]
      %v273 = vld.sshfl [vmem:[#allocation1 + $0x8] sm:$0xff pattern:$0x75316420]
      %v274 = vld.sshfl [vmem:[#allocation1 + $0x10] sm:$0xff pattern:$0x75316420]
      %v276 = vsel %vm198, %v174, 0
      %v278 = vsel %vm202, %v272, 0
      %v280 = vsel %vm202, %v273, 0
      %v282 = vsel %vm202, %v274, 0
      %284 = vmatpush.msra.mxu0 0.0
      %285 = vmatpush.msra.mxu0 0.0
      %286 = vmatpush.msra.mxu0 0.0
      %287 = vmatpush.msra.mxu0 0.0
      %288 = vmatpush.msra.mxu0 0.0
      %289 = vmatpush.msra.mxu0 0.0
      %290 = vmatpush.msra.mxu0 0.0
      %291 = vmatpush.msra.mxu0 0.0
      %292 = vmatpush.msra.mxu0 0.0
      %293 = vmatpush.msra.mxu0 0.0
      %294 = vmatpush.msra.mxu0 0.0
      %295 = vmatpush.msra.mxu0 0.0
      %296 = vmatpush.msra.mxu0 0.0
      %297 = vmatpush.msra.mxu0 0.0
      %298 = vmatpush.msra.mxu0 0.0
      %299 = vmatpush.msra.mxu0 %v278
      %300 = vmatmul.f32.gmra.mxu0 %v276
      %v301 = vpop.f32.mrf.mxu0
      %v302 = vadd.f32 %v227, %v301
      %303 = vdwg.mxu0
      %304 = vmatpush.msra.mxu0 0.0
      %305 = vmatpush.msra.mxu0 0.0
      %306 = vmatpush.msra.mxu0 0.0
      %307 = vmatpush.msra.mxu0 0.0
      %308 = vmatpush.msra.mxu0 0.0
      %309 = vmatpush.msra.mxu0 0.0
      %310 = vmatpush.msra.mxu0 0.0
      %311 = vmatpush.msra.mxu0 0.0
      %312 = vmatpush.msra.mxu0 0.0
      %313 = vmatpush.msra.mxu0 0.0
      %314 = vmatpush.msra.mxu0 0.0
      %315 = vmatpush.msra.mxu0 0.0
      %316 = vmatpush.msra.mxu0 0.0
      %317 = vmatpush.msra.mxu0 0.0
      %318 = vmatpush.msra.mxu0 0.0
      %319 = vmatpush.msra.mxu0 %v280
      %320 = vmatmul.f32.gmra.mxu0 %v276
      %v321 = vpop.f32.mrf.mxu0
      %v322 = vadd.f32 %v247, %v321
      %323 = vdwg.mxu0
      %324 = vmatpush.msra.mxu0 0.0
      %325 = vmatpush.msra.mxu0 0.0
      %326 = vmatpush.msra.mxu0 0.0
      %327 = vmatpush.msra.mxu0 0.0
      %328 = vmatpush.msra.mxu0 0.0
      %329 = vmatpush.msra.mxu0 0.0
      %330 = vmatpush.msra.mxu0 0.0
      %331 = vmatpush.msra.mxu0 0.0
      %332 = vmatpush.msra.mxu0 0.0
      %333 = vmatpush.msra.mxu0 0.0
      %334 = vmatpush.msra.mxu0 0.0
      %335 = vmatpush.msra.mxu0 0.0
      %336 = vmatpush.msra.mxu0 0.0
      %337 = vmatpush.msra.mxu0 0.0
      %338 = vmatpush.msra.mxu0 0.0
      %339 = vmatpush.msra.mxu0 %v282
      %340 = vmatmul.f32.gmra.mxu0 %v276
      %v341 = vpop.f32.mrf.mxu0
      %v342 = vadd.f32 %v267, %v341
      %343 = vdwg.mxu0
      %s344 = scalar_lea.vmem %s0, 16
      %v345 = vld [vmem:[%s344] sm:$0xff]
      %346 = vst [vmem:[#allocation1] ss:$2 sm:$0xff] %v172
      %s347 = scalar_lea.vmem [#allocation1], 16
      %348 = vst [vmem:[%s347] ss:$2 sm:$0xff] %v173
      %v349 = vld.sshfl [vmem:[#allocation1] sm:$0xff pattern:$0x75316420]
      %v350 = vld.sshfl [vmem:[#allocation1 + $0x8] sm:$0xff pattern:$0x75316420]
      %v351 = vld.sshfl [vmem:[#allocation1 + $0x10] sm:$0xff pattern:$0x75316420]
      %v352 = vld.sshfl [vmem:[#allocation1 + $0x18] sm:$0xff pattern:$0x75316420]
      %353 = vrot.lane.b32.xlu0 %v349, 126
      %v354 = vpop.permute.xlu0 %353
      %355 = vrot.lane.b32.xlu0 %v350, 126
      %v356 = vpop.permute.xlu0 %355
      %357 = vrot.lane.b32.xlu0 %v351, 126
      %v358 = vpop.permute.xlu0 %357
      %359 = vrot.lane.b32.xlu0 %v352, 126
      %v360 = vpop.permute.xlu0 %359
      %vm361 = vcmask 1031168
      %v362 = vsel %vm361, %v354, %v356
      %v363 = vsel %vm361, %v356, %v358
      %v364 = vsel %vm361, %v358, %v360
      %v366 = vsel %vm198, %v345, 0
      %v368 = vsel %vm202, %v362, 0
      %v370 = vsel %vm202, %v363, 0
      %v372 = vsel %vm202, %v364, 0
      %374 = vmatpush.msra.mxu0 0.0
      %375 = vmatpush.msra.mxu0 0.0
      %376 = vmatpush.msra.mxu0 0.0
      %377 = vmatpush.msra.mxu0 0.0
      %378 = vmatpush.msra.mxu0 0.0
      %379 = vmatpush.msra.mxu0 0.0
      %380 = vmatpush.msra.mxu0 0.0
      %381 = vmatpush.msra.mxu0 0.0
      %382 = vmatpush.msra.mxu0 0.0
      %383 = vmatpush.msra.mxu0 0.0
      %384 = vmatpush.msra.mxu0 0.0
      %385 = vmatpush.msra.mxu0 0.0
      %386 = vmatpush.msra.mxu0 0.0
      %387 = vmatpush.msra.mxu0 0.0
      %388 = vmatpush.msra.mxu0 0.0
      %389 = vmatpush.msra.mxu0 %v368
      %390 = vmatmul.f32.gmra.mxu0 %v366
      %v391 = vpop.f32.mrf.mxu0
      %v392 = vadd.f32 0.0, %v391
      %393 = vdwg.mxu0
      %394 = vmatpush.msra.mxu0 0.0
      %395 = vmatpush.msra.mxu0 0.0
      %396 = vmatpush.msra.mxu0 0.0
      %397 = vmatpush.msra.mxu0 0.0
      %398 = vmatpush.msra.mxu0 0.0
      %399 = vmatpush.msra.mxu0 0.0
      %400 = vmatpush.msra.mxu0 0.0
      %401 = vmatpush.msra.mxu0 0.0
      %402 = vmatpush.msra.mxu0 0.0
      %403 = vmatpush.msra.mxu0 0.0
      %404 = vmatpush.msra.mxu0 0.0
      %405 = vmatpush.msra.mxu0 0.0
      %406 = vmatpush.msra.mxu0 0.0
      %407 = vmatpush.msra.mxu0 0.0
      %408 = vmatpush.msra.mxu0 0.0
      %409 = vmatpush.msra.mxu0 %v370
      %410 = vmatmul.f32.gmra.mxu0 %v366
      %v411 = vpop.f32.mrf.mxu0
      %v412 = vadd.f32 0.0, %v411
      %413 = vdwg.mxu0
      %414 = vmatpush.msra.mxu0 0.0
      %415 = vmatpush.msra.mxu0 0.0
      %416 = vmatpush.msra.mxu0 0.0
      %417 = vmatpush.msra.mxu0 0.0
      %418 = vmatpush.msra.mxu0 0.0
      %419 = vmatpush.msra.mxu0 0.0
      %420 = vmatpush.msra.mxu0 0.0
      %421 = vmatpush.msra.mxu0 0.0
      %422 = vmatpush.msra.mxu0 0.0
      %423 = vmatpush.msra.mxu0 0.0
      %424 = vmatpush.msra.mxu0 0.0
      %425 = vmatpush.msra.mxu0 0.0
      %426 = vmatpush.msra.mxu0 0.0
      %427 = vmatpush.msra.mxu0 0.0
      %428 = vmatpush.msra.mxu0 0.0
      %429 = vmatpush.msra.mxu0 %v372
      %430 = vmatmul.f32.gmra.mxu0 %v366
      %v431 = vpop.f32.mrf.mxu0
      %v432 = vadd.f32 0.0, %v431
      %433 = vdwg.mxu0
      %v434 = vadd.f32 %v302, %v392
      %v435 = vadd.f32 %v322, %v412
      %v436 = vadd.f32 %v342, %v432
      %s437 = scalar_lea.vmem %s0, 24
      %v438 = vld [vmem:[%s437] sm:$0xff]
      %439 = vst [vmem:[#allocation1] ss:$2 sm:$0xff] %v172
      %s440 = scalar_lea.vmem [#allocation1], 16
      %441 = vst [vmem:[%s440] ss:$2 sm:$0xff] %v173
      %v442 = vld.sshfl [vmem:[#allocation1] sm:$0xff pattern:$0x75316420]
      %v443 = vld.sshfl [vmem:[#allocation1 + $0x8] sm:$0xff pattern:$0x75316420]
      %v444 = vld.sshfl [vmem:[#allocation1 + $0x10] sm:$0xff pattern:$0x75316420]
      %v445 = vld.sshfl [vmem:[#allocation1 + $0x18] sm:$0xff pattern:$0x75316420]
      %446 = vrot.lane.b32.xlu0 %v442, 110
      %v447 = vpop.permute.xlu0 %446
      %448 = vrot.lane.b32.xlu0 %v443, 110
      %v449 = vpop.permute.xlu0 %448
      %450 = vrot.lane.b32.xlu0 %v444, 110
      %v451 = vpop.permute.xlu0 %450
      %452 = vrot.lane.b32.xlu0 %v445, 110
      %v453 = vpop.permute.xlu0 %452
      %vm454 = vcmask 900096
      %v455 = vsel %vm454, %v447, %v449
      %v456 = vsel %vm454, %v449, %v451
      %v457 = vsel %vm454, %v451, %v453
      %v459 = vsel %vm198, %v438, 0
      %v461 = vsel %vm202, %v455, 0
      %v463 = vsel %vm202, %v456, 0
      %v465 = vsel %vm202, %v457, 0
      %467 = vmatpush.msra.mxu0 0.0
      %468 = vmatpush.msra.mxu0 0.0
      %469 = vmatpush.msra.mxu0 0.0
      %470 = vmatpush.msra.mxu0 0.0
      %471 = vmatpush.msra.mxu0 0.0
      %472 = vmatpush.msra.mxu0 0.0
      %473 = vmatpush.msra.mxu0 0.0
      %474 = vmatpush.msra.mxu0 0.0
      %475 = vmatpush.msra.mxu0 0.0
      %476 = vmatpush.msra.mxu0 0.0
      %477 = vmatpush.msra.mxu0 0.0
      %478 = vmatpush.msra.mxu0 0.0
      %479 = vmatpush.msra.mxu0 0.0
      %480 = vmatpush.msra.mxu0 0.0
      %481 = vmatpush.msra.mxu0 0.0
      %482 = vmatpush.msra.mxu0 %v461
      %483 = vmatmul.f32.gmra.mxu0 %v459
      %v484 = vpop.f32.mrf.mxu0
      %v485 = vadd.f32 0.0, %v484
      %486 = vdwg.mxu0
      %487 = vmatpush.msra.mxu0 0.0
      %488 = vmatpush.msra.mxu0 0.0
      %489 = vmatpush.msra.mxu0 0.0
      %490 = vmatpush.msra.mxu0 0.0
      %491 = vmatpush.msra.mxu0 0.0
      %492 = vmatpush.msra.mxu0 0.0
      %493 = vmatpush.msra.mxu0 0.0
      %494 = vmatpush.msra.mxu0 0.0
      %495 = vmatpush.msra.mxu0 0.0
      %496 = vmatpush.msra.mxu0 0.0
      %497 = vmatpush.msra.mxu0 0.0
      %498 = vmatpush.msra.mxu0 0.0
      %499 = vmatpush.msra.mxu0 0.0
      %500 = vmatpush.msra.mxu0 0.0
      %501 = vmatpush.msra.mxu0 0.0
      %502 = vmatpush.msra.mxu0 %v463
      %503 = vmatmul.f32.gmra.mxu0 %v459
      %v504 = vpop.f32.mrf.mxu0
      %v505 = vadd.f32 0.0, %v504
      %506 = vdwg.mxu0
      %507 = vmatpush.msra.mxu0 0.0
      %508 = vmatpush.msra.mxu0 0.0
      %509 = vmatpush.msra.mxu0 0.0
      %510 = vmatpush.msra.mxu0 0.0
      %511 = vmatpush.msra.mxu0 0.0
      %512 = vmatpush.msra.mxu0 0.0
      %513 = vmatpush.msra.mxu0 0.0
      %514 = vmatpush.msra.mxu0 0.0
      %515 = vmatpush.msra.mxu0 0.0
      %516 = vmatpush.msra.mxu0 0.0
      %517 = vmatpush.msra.mxu0 0.0
      %518 = vmatpush.msra.mxu0 0.0
      %519 = vmatpush.msra.mxu0 0.0
      %520 = vmatpush.msra.mxu0 0.0
      %521 = vmatpush.msra.mxu0 0.0
      %522 = vmatpush.msra.mxu0 %v465
      %523 = vmatmul.f32.gmra.mxu0 %v459
      %v524 = vpop.f32.mrf.mxu0
      %v525 = vadd.f32 0.0, %v524
      %526 = vdwg.mxu0
      %v527 = vadd.f32 %v434, %v485
      %v528 = vadd.f32 %v435, %v505
      %v529 = vadd.f32 %v436, %v525
      %s530 = scalar_lea.vmem %s0, 32
      %v531 = vld [vmem:[%s530] sm:$0xff]
      %532 = vst [vmem:[#allocation1] ss:$2 sm:$0xff] %v172
      %s533 = scalar_lea.vmem [#allocation1], 16
      %534 = vst [vmem:[%s533] ss:$2 sm:$0xff] %v173
      %v535 = vld.sshfl [vmem:[#allocation1] sm:$0xff pattern:$0x75316420]
      %v536 = vld.sshfl [vmem:[#allocation1 + $0x8] sm:$0xff pattern:$0x75316420]
      %v537 = vld.sshfl [vmem:[#allocation1 + $0x10] sm:$0xff pattern:$0x75316420]
      %v538 = vld.sshfl [vmem:[#allocation1 + $0x18] sm:$0xff pattern:$0x75316420]
      %539 = vrot.lane.b32.xlu0 %v535, 109
      %v540 = vpop.permute.xlu0 %539
      %541 = vrot.lane.b32.xlu0 %v536, 109
      %v542 = vpop.permute.xlu0 %541
      %543 = vrot.lane.b32.xlu0 %v537, 109
      %v544 = vpop.permute.xlu0 %543
      %545 = vrot.lane.b32.xlu0 %v538, 109
      %v546 = vpop.permute.xlu0 %545
      %vm547 = vcmask 891904
      %v548 = vsel %vm547, %v540, %v542
      %v549 = vsel %vm547, %v542, %v544
      %v550 = vsel %vm547, %v544, %v546
      %v552 = vsel %vm198, %v531, 0
      %v554 = vsel %vm202, %v548, 0
      %v556 = vsel %vm202, %v549, 0
      %v558 = vsel %vm202, %v550, 0
      %560 = vmatpush.msra.mxu0 0.0
      %561 = vmatpush.msra.mxu0 0.0
      %562 = vmatpush.msra.mxu0 0.0
      %563 = vmatpush.msra.mxu0 0.0
      %564 = vmatpush.msra.mxu0 0.0
      %565 = vmatpush.msra.mxu0 0.0
      %566 = vmatpush.msra.mxu0 0.0
      %567 = vmatpush.msra.mxu0 0.0
      %568 = vmatpush.msra.mxu0 0.0
      %569 = vmatpush.msra.mxu0 0.0
      %570 = vmatpush.msra.mxu0 0.0
      %571 = vmatpush.msra.mxu0 0.0
      %572 = vmatpush.msra.mxu0 0.0
      %573 = vmatpush.msra.mxu0 0.0
      %574 = vmatpush.msra.mxu0 0.0
      %575 = vmatpush.msra.mxu0 %v554
      %576 = vmatmul.f32.gmra.mxu0 %v552
      %v577 = vpop.f32.mrf.mxu0
      %v578 = vadd.f32 0.0, %v577
      %579 = vdwg.mxu0
      %580 = vmatpush.msra.mxu0 0.0
      %581 = vmatpush.msra.mxu0 0.0
      %582 = vmatpush.msra.mxu0 0.0
      %583 = vmatpush.msra.mxu0 0.0
      %584 = vmatpush.msra.mxu0 0.0
      %585 = vmatpush.msra.mxu0 0.0
      %586 = vmatpush.msra.mxu0 0.0
      %587 = vmatpush.msra.mxu0 0.0
      %588 = vmatpush.msra.mxu0 0.0
      %589 = vmatpush.msra.mxu0 0.0
      %590 = vmatpush.msra.mxu0 0.0
      %591 = vmatpush.msra.mxu0 0.0
      %592 = vmatpush.msra.mxu0 0.0
      %593 = vmatpush.msra.mxu0 0.0
      %594 = vmatpush.msra.mxu0 0.0
      %595 = vmatpush.msra.mxu0 %v556
      %596 = vmatmul.f32.gmra.mxu0 %v552
      %v597 = vpop.f32.mrf.mxu0
      %v598 = vadd.f32 0.0, %v597
      %599 = vdwg.mxu0
      %600 = vmatpush.msra.mxu0 0.0
      %601 = vmatpush.msra.mxu0 0.0
      %602 = vmatpush.msra.mxu0 0.0
      %603 = vmatpush.msra.mxu0 0.0
      %604 = vmatpush.msra.mxu0 0.0
      %605 = vmatpush.msra.mxu0 0.0
      %606 = vmatpush.msra.mxu0 0.0
      %607 = vmatpush.msra.mxu0 0.0
      %608 = vmatpush.msra.mxu0 0.0
      %609 = vmatpush.msra.mxu0 0.0
      %610 = vmatpush.msra.mxu0 0.0
      %611 = vmatpush.msra.mxu0 0.0
      %612 = vmatpush.msra.mxu0 0.0
      %613 = vmatpush.msra.mxu0 0.0
      %614 = vmatpush.msra.mxu0 0.0
      %615 = vmatpush.msra.mxu0 %v558
      %616 = vmatmul.f32.gmra.mxu0 %v552
      %v617 = vpop.f32.mrf.mxu0
      %v618 = vadd.f32 0.0, %v617
      %619 = vdwg.mxu0
      %v620 = vadd.f32 %v527, %v578
      %v621 = vadd.f32 %v528, %v598
      %v622 = vadd.f32 %v529, %v618
      %s623 = scalar_lea.vmem %s0, 40
      %v624 = vld [vmem:[%s623] sm:$0xff]
      %625 = vst [vmem:[#allocation1] ss:$2 sm:$0xff] %v172
      %s626 = scalar_lea.vmem [#allocation1], 16
      %627 = vst [vmem:[%s626] ss:$2 sm:$0xff] %v173
      %v628 = vld.sshfl [vmem:[#allocation1] sm:$0xff pattern:$0x75316420]
      %v629 = vld.sshfl [vmem:[#allocation1 + $0x8] sm:$0xff pattern:$0x75316420]
      %v630 = vld.sshfl [vmem:[#allocation1 + $0x10] sm:$0xff pattern:$0x75316420]
      %v631 = vld.sshfl [vmem:[#allocation1 + $0x18] sm:$0xff pattern:$0x75316420]
      %632 = vrot.lane.b32.xlu0 %v628, 108
      %v633 = vpop.permute.xlu0 %632
      %634 = vrot.lane.b32.xlu0 %v629, 108
      %v635 = vpop.permute.xlu0 %634
      %636 = vrot.lane.b32.xlu0 %v630, 108
      %v637 = vpop.permute.xlu0 %636
      %638 = vrot.lane.b32.xlu0 %v631, 108
      %v639 = vpop.permute.xlu0 %638
      %vm640 = vcmask 883712
      %v641 = vsel %vm640, %v633, %v635
      %v642 = vsel %vm640, %v635, %v637
      %v643 = vsel %vm640, %v637, %v639
      %v645 = vsel %vm198, %v624, 0
      %v647 = vsel %vm202, %v641, 0
      %v649 = vsel %vm202, %v642, 0
      %v651 = vsel %vm202, %v643, 0
      %653 = vmatpush.msra.mxu0 0.0
      %654 = vmatpush.msra.mxu0 0.0
      %655 = vmatpush.msra.mxu0 0.0
      %656 = vmatpush.msra.mxu0 0.0
      %657 = vmatpush.msra.mxu0 0.0
      %658 = vmatpush.msra.mxu0 0.0
      %659 = vmatpush.msra.mxu0 0.0
      %660 = vmatpush.msra.mxu0 0.0
      %661 = vmatpush.msra.mxu0 0.0
      %662 = vmatpush.msra.mxu0 0.0
      %663 = vmatpush.msra.mxu0 0.0
      %664 = vmatpush.msra.mxu0 0.0
      %665 = vmatpush.msra.mxu0 0.0
      %666 = vmatpush.msra.mxu0 0.0
      %667 = vmatpush.msra.mxu0 0.0
      %668 = vmatpush.msra.mxu0 %v647
      %669 = vmatmul.f32.gmra.mxu0 %v645
      %v670 = vpop.f32.mrf.mxu0
      %v671 = vadd.f32 0.0, %v670
      %672 = vdwg.mxu0
      %673 = vmatpush.msra.mxu0 0.0
      %674 = vmatpush.msra.mxu0 0.0
      %675 = vmatpush.msra.mxu0 0.0
      %676 = vmatpush.msra.mxu0 0.0
      %677 = vmatpush.msra.mxu0 0.0
      %678 = vmatpush.msra.mxu0 0.0
      %679 = vmatpush.msra.mxu0 0.0
      %680 = vmatpush.msra.mxu0 0.0
      %681 = vmatpush.msra.mxu0 0.0
      %682 = vmatpush.msra.mxu0 0.0
      %683 = vmatpush.msra.mxu0 0.0
      %684 = vmatpush.msra.mxu0 0.0
      %685 = vmatpush.msra.mxu0 0.0
      %686 = vmatpush.msra.mxu0 0.0
      %687 = vmatpush.msra.mxu0 0.0
      %688 = vmatpush.msra.mxu0 %v649
      %689 = vmatmul.f32.gmra.mxu0 %v645
      %v690 = vpop.f32.mrf.mxu0
      %v691 = vadd.f32 0.0, %v690
      %692 = vdwg.mxu0
      %693 = vmatpush.msra.mxu0 0.0
      %694 = vmatpush.msra.mxu0 0.0
      %695 = vmatpush.msra.mxu0 0.0
      %696 = vmatpush.msra.mxu0 0.0
      %697 = vmatpush.msra.mxu0 0.0
      %698 = vmatpush.msra.mxu0 0.0
      %699 = vmatpush.msra.mxu0 0.0
      %700 = vmatpush.msra.mxu0 0.0
      %701 = vmatpush.msra.mxu0 0.0
      %702 = vmatpush.msra.mxu0 0.0
      %703 = vmatpush.msra.mxu0 0.0
      %704 = vmatpush.msra.mxu0 0.0
      %705 = vmatpush.msra.mxu0 0.0
      %706 = vmatpush.msra.mxu0 0.0
      %707 = vmatpush.msra.mxu0 0.0
      %708 = vmatpush.msra.mxu0 %v651
      %709 = vmatmul.f32.gmra.mxu0 %v645
      %v710 = vpop.f32.mrf.mxu0
      %v711 = vadd.f32 0.0, %v710
      %712 = vdwg.mxu0
      %v713 = vadd.f32 %v620, %v671
      %v714 = vadd.f32 %v621, %v691
      %v715 = vadd.f32 %v622, %v711
      %s716 = scalar_lea.vmem %s0, 48
      %v717 = vld [vmem:[%s716] sm:$0xff]
      %718 = vst [vmem:[#allocation1] ss:$2 sm:$0xff] %v172
      %s719 = scalar_lea.vmem [#allocation1], 16
      %720 = vst [vmem:[%s719] ss:$2 sm:$0xff] %v173
      %v721 = vld.sshfl [vmem:[#allocation1] sm:$0xff pattern:$0x75316420]
      %v722 = vld.sshfl [vmem:[#allocation1 + $0x8] sm:$0xff pattern:$0x75316420]
      %v723 = vld.sshfl [vmem:[#allocation1 + $0x10] sm:$0xff pattern:$0x75316420]
      %v724 = vld.sshfl [vmem:[#allocation1 + $0x18] sm:$0xff pattern:$0x75316420]
      %725 = vrot.lane.b32.xlu0 %v721, 92
      %v726 = vpop.permute.xlu0 %725
      %727 = vrot.lane.b32.xlu0 %v722, 92
      %v728 = vpop.permute.xlu0 %727
      %729 = vrot.lane.b32.xlu0 %v723, 92
      %v730 = vpop.permute.xlu0 %729
      %731 = vrot.lane.b32.xlu0 %v724, 92
      %v732 = vpop.permute.xlu0 %731
      %vm733 = vcmask 752640
      %v734 = vsel %vm733, %v726, %v728
      %v735 = vsel %vm733, %v728, %v730
      %v736 = vsel %vm733, %v730, %v732
      %v738 = vsel %vm198, %v717, 0
      %v740 = vsel %vm202, %v734, 0
      %v742 = vsel %vm202, %v735, 0
      %v744 = vsel %vm202, %v736, 0
      %746 = vmatpush.msra.mxu0 0.0
      %747 = vmatpush.msra.mxu0 0.0
      %748 = vmatpush.msra.mxu0 0.0
      %749 = vmatpush.msra.mxu0 0.0
      %750 = vmatpush.msra.mxu0 0.0
      %751 = vmatpush.msra.mxu0 0.0
      %752 = vmatpush.msra.mxu0 0.0
      %753 = vmatpush.msra.mxu0 0.0
      %754 = vmatpush.msra.mxu0 0.0
      %755 = vmatpush.msra.mxu0 0.0
      %756 = vmatpush.msra.mxu0 0.0
      %757 = vmatpush.msra.mxu0 0.0
      %758 = vmatpush.msra.mxu0 0.0
      %759 = vmatpush.msra.mxu0 0.0
      %760 = vmatpush.msra.mxu0 0.0
      %761 = vmatpush.msra.mxu0 %v740
      %762 = vmatmul.f32.gmra.mxu0 %v738
      %v763 = vpop.f32.mrf.mxu0
      %v764 = vadd.f32 0.0, %v763
      %765 = vdwg.mxu0
      %766 = vmatpush.msra.mxu0 0.0
      %767 = vmatpush.msra.mxu0 0.0
      %768 = vmatpush.msra.mxu0 0.0
      %769 = vmatpush.msra.mxu0 0.0
      %770 = vmatpush.msra.mxu0 0.0
      %771 = vmatpush.msra.mxu0 0.0
      %772 = vmatpush.msra.mxu0 0.0
      %773 = vmatpush.msra.mxu0 0.0
      %774 = vmatpush.msra.mxu0 0.0
      %775 = vmatpush.msra.mxu0 0.0
      %776 = vmatpush.msra.mxu0 0.0
      %777 = vmatpush.msra.mxu0 0.0
      %778 = vmatpush.msra.mxu0 0.0
      %779 = vmatpush.msra.mxu0 0.0
      %780 = vmatpush.msra.mxu0 0.0
      %781 = vmatpush.msra.mxu0 %v742
      %782 = vmatmul.f32.gmra.mxu0 %v738
      %v783 = vpop.f32.mrf.mxu0
      %v784 = vadd.f32 0.0, %v783
      %785 = vdwg.mxu0
      %786 = vmatpush.msra.mxu0 0.0
      %787 = vmatpush.msra.mxu0 0.0
      %788 = vmatpush.msra.mxu0 0.0
      %789 = vmatpush.msra.mxu0 0.0
      %790 = vmatpush.msra.mxu0 0.0
      %791 = vmatpush.msra.mxu0 0.0
      %792 = vmatpush.msra.mxu0 0.0
      %793 = vmatpush.msra.mxu0 0.0
      %794 = vmatpush.msra.mxu0 0.0
      %795 = vmatpush.msra.mxu0 0.0
      %796 = vmatpush.msra.mxu0 0.0
      %797 = vmatpush.msra.mxu0 0.0
      %798 = vmatpush.msra.mxu0 0.0
      %799 = vmatpush.msra.mxu0 0.0
      %800 = vmatpush.msra.mxu0 0.0
      %801 = vmatpush.msra.mxu0 %v744
      %802 = vmatmul.f32.gmra.mxu0 %v738
      %v803 = vpop.f32.mrf.mxu0
      %v804 = vadd.f32 0.0, %v803
      %805 = vdwg.mxu0
      %v806 = vadd.f32 %v713, %v764
      %v807 = vadd.f32 %v714, %v784
      %v808 = vadd.f32 %v715, %v804
      %s809 = scalar_lea.vmem %s0, 56
      %v810 = vld [vmem:[%s809] sm:$0xff]
      %811 = vst [vmem:[#allocation1] ss:$2 sm:$0xff] %v172
      %s812 = scalar_lea.vmem [#allocation1], 16
      %813 = vst [vmem:[%s812] ss:$2 sm:$0xff] %v173
      %v814 = vld.sshfl [vmem:[#allocation1] sm:$0xff pattern:$0x75316420]
      %v815 = vld.sshfl [vmem:[#allocation1 + $0x8] sm:$0xff pattern:$0x75316420]
      %v816 = vld.sshfl [vmem:[#allocation1 + $0x10] sm:$0xff pattern:$0x75316420]
      %v817 = vld.sshfl [vmem:[#allocation1 + $0x18] sm:$0xff pattern:$0x75316420]
      %818 = vrot.lane.b32.xlu0 %v814, 91
      %v819 = vpop.permute.xlu0 %818
      %820 = vrot.lane.b32.xlu0 %v815, 91
      %v821 = vpop.permute.xlu0 %820
      %822 = vrot.lane.b32.xlu0 %v816, 91
      %v823 = vpop.permute.xlu0 %822
      %824 = vrot.lane.b32.xlu0 %v817, 91
      %v825 = vpop.permute.xlu0 %824
      %vm826 = vcmask 744448
      %v827 = vsel %vm826, %v819, %v821
      %v828 = vsel %vm826, %v821, %v823
      %v829 = vsel %vm826, %v823, %v825
      %v831 = vsel %vm198, %v810, 0
      %v833 = vsel %vm202, %v827, 0
      %v835 = vsel %vm202, %v828, 0
      %v837 = vsel %vm202, %v829, 0
      %839 = vmatpush.msra.mxu0 0.0
      %840 = vmatpush.msra.mxu0 0.0
      %841 = vmatpush.msra.mxu0 0.0
      %842 = vmatpush.msra.mxu0 0.0
      %843 = vmatpush.msra.mxu0 0.0
      %844 = vmatpush.msra.mxu0 0.0
      %845 = vmatpush.msra.mxu0 0.0
      %846 = vmatpush.msra.mxu0 0.0
      %847 = vmatpush.msra.mxu0 0.0
      %848 = vmatpush.msra.mxu0 0.0
      %849 = vmatpush.msra.mxu0 0.0
      %850 = vmatpush.msra.mxu0 0.0
      %851 = vmatpush.msra.mxu0 0.0
      %852 = vmatpush.msra.mxu0 0.0
      %853 = vmatpush.msra.mxu0 0.0
      %854 = vmatpush.msra.mxu0 %v833
      %855 = vmatmul.f32.gmra.mxu0 %v831
      %v856 = vpop.f32.mrf.mxu0
      %v857 = vadd.f32 0.0, %v856
      %858 = vdwg.mxu0
      %859 = vmatpush.msra.mxu0 0.0
      %860 = vmatpush.msra.mxu0 0.0
      %861 = vmatpush.msra.mxu0 0.0
      %862 = vmatpush.msra.mxu0 0.0
      %863 = vmatpush.msra.mxu0 0.0
      %864 = vmatpush.msra.mxu0 0.0
      %865 = vmatpush.msra.mxu0 0.0
      %866 = vmatpush.msra.mxu0 0.0
      %867 = vmatpush.msra.mxu0 0.0
      %868 = vmatpush.msra.mxu0 0.0
      %869 = vmatpush.msra.mxu0 0.0
      %870 = vmatpush.msra.mxu0 0.0
      %871 = vmatpush.msra.mxu0 0.0
      %872 = vmatpush.msra.mxu0 0.0
      %873 = vmatpush.msra.mxu0 0.0
      %874 = vmatpush.msra.mxu0 %v835
      %875 = vmatmul.f32.gmra.mxu0 %v831
      %v876 = vpop.f32.mrf.mxu0
      %v877 = vadd.f32 0.0, %v876
      %878 = vdwg.mxu0
      %879 = vmatpush.msra.mxu0 0.0
      %880 = vmatpush.msra.mxu0 0.0
      %881 = vmatpush.msra.mxu0 0.0
      %882 = vmatpush.msra.mxu0 0.0
      %883 = vmatpush.msra.mxu0 0.0
      %884 = vmatpush.msra.mxu0 0.0
      %885 = vmatpush.msra.mxu0 0.0
      %886 = vmatpush.msra.mxu0 0.0
      %887 = vmatpush.msra.mxu0 0.0
      %888 = vmatpush.msra.mxu0 0.0
      %889 = vmatpush.msra.mxu0 0.0
      %890 = vmatpush.msra.mxu0 0.0
      %891 = vmatpush.msra.mxu0 0.0
      %892 = vmatpush.msra.mxu0 0.0
      %893 = vmatpush.msra.mxu0 0.0
      %894 = vmatpush.msra.mxu0 %v837
      %895 = vmatmul.f32.gmra.mxu0 %v831
      %v896 = vpop.f32.mrf.mxu0
      %v897 = vadd.f32 0.0, %v896
      %898 = vdwg.mxu0
      %v899 = vadd.f32 %v806, %v857
      %v900 = vadd.f32 %v807, %v877
      %v901 = vadd.f32 %v808, %v897
      %s902 = scalar_lea.vmem %s0, 64
      %v903 = vld [vmem:[%s902] sm:$0xff]
      %904 = vst [vmem:[#allocation1] ss:$2 sm:$0xff] %v172
      %s905 = scalar_lea.vmem [#allocation1], 16
      %906 = vst [vmem:[%s905] ss:$2 sm:$0xff] %v173
      %v907 = vld.sshfl [vmem:[#allocation1] sm:$0xff pattern:$0x75316420]
      %v908 = vld.sshfl [vmem:[#allocation1 + $0x8] sm:$0xff pattern:$0x75316420]
      %v909 = vld.sshfl [vmem:[#allocation1 + $0x10] sm:$0xff pattern:$0x75316420]
      %v910 = vld.sshfl [vmem:[#allocation1 + $0x18] sm:$0xff pattern:$0x75316420]
      %911 = vrot.lane.b32.xlu0 %v907, 90
      %v912 = vpop.permute.xlu0 %911
      %913 = vrot.lane.b32.xlu0 %v908, 90
      %v914 = vpop.permute.xlu0 %913
      %915 = vrot.lane.b32.xlu0 %v909, 90
      %v916 = vpop.permute.xlu0 %915
      %917 = vrot.lane.b32.xlu0 %v910, 90
      %v918 = vpop.permute.xlu0 %917
      %vm919 = vcmask 736256
      %v920 = vsel %vm919, %v912, %v914
      %v921 = vsel %vm919, %v914, %v916
      %v922 = vsel %vm919, %v916, %v918
      %v924 = vsel %vm198, %v903, 0
      %v926 = vsel %vm202, %v920, 0
      %v928 = vsel %vm202, %v921, 0
      %v930 = vsel %vm202, %v922, 0
      %932 = vmatpush.msra.mxu0 0.0
      %933 = vmatpush.msra.mxu0 0.0
      %934 = vmatpush.msra.mxu0 0.0
      %935 = vmatpush.msra.mxu0 0.0
      %936 = vmatpush.msra.mxu0 0.0
      %937 = vmatpush.msra.mxu0 0.0
      %938 = vmatpush.msra.mxu0 0.0
      %939 = vmatpush.msra.mxu0 0.0
      %940 = vmatpush.msra.mxu0 0.0
      %941 = vmatpush.msra.mxu0 0.0
      %942 = vmatpush.msra.mxu0 0.0
      %943 = vmatpush.msra.mxu0 0.0
      %944 = vmatpush.msra.mxu0 0.0
      %945 = vmatpush.msra.mxu0 0.0
      %946 = vmatpush.msra.mxu0 0.0
      %947 = vmatpush.msra.mxu0 %v926
      %948 = vmatmul.f32.gmra.mxu0 %v924
      %v949 = vpop.f32.mrf.mxu0
      %v950 = vadd.f32 0.0, %v949
      %951 = vdwg.mxu0
      %952 = vmatpush.msra.mxu0 0.0
      %953 = vmatpush.msra.mxu0 0.0
      %954 = vmatpush.msra.mxu0 0.0
      %955 = vmatpush.msra.mxu0 0.0
      %956 = vmatpush.msra.mxu0 0.0
      %957 = vmatpush.msra.mxu0 0.0
      %958 = vmatpush.msra.mxu0 0.0
      %959 = vmatpush.msra.mxu0 0.0
      %960 = vmatpush.msra.mxu0 0.0
      %961 = vmatpush.msra.mxu0 0.0
      %962 = vmatpush.msra.mxu0 0.0
      %963 = vmatpush.msra.mxu0 0.0
      %964 = vmatpush.msra.mxu0 0.0
      %965 = vmatpush.msra.mxu0 0.0
      %966 = vmatpush.msra.mxu0 0.0
      %967 = vmatpush.msra.mxu0 %v928
      %968 = vmatmul.f32.gmra.mxu0 %v924
      %v969 = vpop.f32.mrf.mxu0
      %v970 = vadd.f32 0.0, %v969
      %971 = vdwg.mxu0
      %972 = vmatpush.msra.mxu0 0.0
      %973 = vmatpush.msra.mxu0 0.0
      %974 = vmatpush.msra.mxu0 0.0
      %975 = vmatpush.msra.mxu0 0.0
      %976 = vmatpush.msra.mxu0 0.0
      %977 = vmatpush.msra.mxu0 0.0
      %978 = vmatpush.msra.mxu0 0.0
      %979 = vmatpush.msra.mxu0 0.0
      %980 = vmatpush.msra.mxu0 0.0
      %981 = vmatpush.msra.mxu0 0.0
      %982 = vmatpush.msra.mxu0 0.0
      %983 = vmatpush.msra.mxu0 0.0
      %984 = vmatpush.msra.mxu0 0.0
      %985 = vmatpush.msra.mxu0 0.0
      %986 = vmatpush.msra.mxu0 0.0
      %987 = vmatpush.msra.mxu0 %v930
      %988 = vmatmul.f32.gmra.mxu0 %v924
      %v989 = vpop.f32.mrf.mxu0
      %v990 = vadd.f32 0.0, %v989
      %991 = vdwg.mxu0
      %v992 = vadd.f32 %v899, %v950
      %v993 = vadd.f32 %v900, %v970
      %v994 = vadd.f32 %v901, %v990
      %v995 = vld [vmem:[%s2] sm:$0xff]
      %997 = vset.pattern.permute.xlu0 0
      %998 = vperm.xlu0 %997, %v995
      %v999 = vpop.permute.xlu0 %998
      %v1001 = vadd.f32 %v992, %v999
      %v1002 = vadd.f32 %v993, %v999
      %v1003 = vadd.f32 %v994, %v999
      %v1004 = vmax.f32 %v1001, 0.0
      %v1005 = vmax.f32 %v1002, 0.0
      %v1006 = vmax.f32 %v1003, 0.0
      %1007 = vst [vmem:[%s170] sm:$0xff] %v1004
      %1008 = vst [vmem:[%s170 + $0x8] sm:$0xff] %v1005
      %1009 = vst [vmem:[%s170 + $0x10] sm:$0xff] %v1006
      %p1010 = scmp.lt.s32.totalorder %s14, 1
      %s1011 = scalar_select %p1010, %s14, 1
      %s1012 = smul.addr %s1011, 3
      %s1013 = smul.addr %s1012, 8
      %s1014 = scalar_lea.vmem %s3, %s1013
      // Predicated region
      $region33: #{my_basic_conv2d.1} parent=31 // pred_check
        %p1015 = pneg %p100
      $region34: #{my_basic_conv2d.1} parent=31 // pred_check_branch
        %1017 = sbr.rel (%p1015) target = $region36
      $region35: #{my_basic_conv2d.1} parent=31 // pred_region
        _
      $region36: #{my_basic_conv2d.1} parent=31 // pred_fallthru
        _
    $region32: #{my_basic_conv2d.1} parent=5 // pred_fallthru
      _
    %p1018 = scmp.le.s32.totalorder 2, %s9
    // Predicated region
    $region37: #{my_basic_conv2d.1} parent=5 // pred_check
      %p1019 = pneg %p1018
    $region38: #{my_basic_conv2d.1} parent=5 // pred_check_branch
      %1021 = sbr.rel (%p1019) target = $region40
    $region39: #{my_basic_conv2d.1} parent=5 // pred_region
      %s1022 = ssub.s32 %s9, 2
      // Predicated region
      $region41: #{my_basic_conv2d.1} parent=39 // pred_check
        %p1023 = pneg %p106
      $region42: #{my_basic_conv2d.1} parent=39 // pred_check_branch
        %1025 = sbr.rel (%p1023) target = $region44
      $region43: #{my_basic_conv2d.1} parent=39 // pred_region
        %p1026 = scmp.lt.s32.totalorder %s15, 1
        %s1027 = scalar_select %p1026, %s15, 1
        %s1028 = smul.addr %s1027, 3
        %s1029 = smul.addr %s1028, 8
        %s1030 = scalar_lea.vmem %s3, %s1029
      $region44: #{my_basic_conv2d.1} parent=39 // pred_fallthru
        _
    $region40: #{my_basic_conv2d.1} parent=5 // pred_fallthru
      _
  $region6: #{my_basic_conv2d.1} parent=0 // loop_footer
    %s13 = sadd.s32 1, %s9
  $region7: #{my_basic_conv2d.1} parent=0 // loop_footer_branch
    %8 = sbr.rel target = $region3
  $region8: #{my_basic_conv2d.1} parent=0 // loop_exit
    _

</llo_original>
